<compile_context>
chip_gen: v5e
topology: v5e:2x2
jax: 0.10.0
libtpu: 0.0.40
codegen_flags: <defaults>
</compile_context>

<pallas_src>
import math

import jax
import jax.numpy as jnp
from jax.experimental import pallas as pl
from jax.experimental.pallas import tpu as pltpu

EPSILON = 1e-8

# Below this element count, fused XLA beats the fixed pallas_call overhead.
_SMALL_FALLBACK_ELEMS = 64 * 1024

_LANE_CANDIDATES = (1024, 512, 256, 128)


# ----------------------------------------------------------------------------
# Math (shared by kernel, fallback, and reference).
# ----------------------------------------------------------------------------
def _poe_math_f32(mu1, lv1, mu2, lv2):
    """Exact ProductOfExperts math: 2 experts + unit-precision prior, in f32."""
    lv1 = jnp.clip(lv1, -10.0, 10.0)
    lv2 = jnp.clip(lv2, -10.0, 10.0)
    p1 = 1.0 / (jnp.exp(lv1) + EPSILON)
    p2 = 1.0 / (jnp.exp(lv2) + EPSILON)
    precision_sum = p1 + p2 + 1.0           # sum over 2 experts + prior
    mu_weighted_sum = mu1 * p1 + mu2 * p2
    sigma_sq = 1.0 / (precision_sum + EPSILON)
    mu_latent = sigma_sq * mu_weighted_sum
    logvar_latent = jnp.log(sigma_sq + EPSILON)
    return mu_latent, logvar_latent


def _poe_kernel(mu1_ref, lv1_ref, mu2_ref, lv2_ref, mu_out_ref, logvar_out_ref):
    # Upcast to f32 inside the kernel (free VPU work hidden under DMA slack;
    # keeps EPSILON meaningful for bf16 I/O and keeps v5e off bf16 math).
    mu1 = mu1_ref[...].astype(jnp.float32)
    lv1 = lv1_ref[...].astype(jnp.float32)
    mu2 = mu2_ref[...].astype(jnp.float32)
    lv2 = lv2_ref[...].astype(jnp.float32)

    mu_latent, logvar_latent = _poe_math_f32(mu1, lv1, mu2, lv2)

    mu_out_ref[...] = mu_latent.astype(mu_out_ref.dtype)
    logvar_out_ref[...] = logvar_latent.astype(logvar_out_ref.dtype)


# ----------------------------------------------------------------------------
# Generation-aware tiling.
# ----------------------------------------------------------------------------
def _vmem_capacity_bytes():
    try:
        info = pltpu.get_tpu_info()
        for attr in ("vmem_capacity_bytes", "vmem_size_bytes", "vmem_bytes"):
            v = getattr(info, attr, None)
            if isinstance(v, int) and v > 0:
                return v
    except Exception:
        pass
    return 64 * 1024 * 1024  # conservative: v7x per-TensorCore VMEM


def _rows_per_tile():
    """Tile height: 1024 rows on 128-MiB-VMEM parts, 512 on 64-MiB parts."""
    try:
        kind = jax.devices()[0].device_kind.lower()
    except Exception:
        kind = ""
    if "v7" in kind:
        return 512
    try:
        if _vmem_capacity_bytes() < 100 * 1024 * 1024:
            return 512
    except Exception:
        return 512
    if any(tag in kind for tag in ("v4", "v5", "v6")):
        return 1024
    return 512  # unknown generation: stay conservative


# ----------------------------------------------------------------------------
# Wrapper.
# ----------------------------------------------------------------------------
def _fused_xla(mu1, logvar1, mu2, logvar2, dtype):
    f32 = [a.astype(jnp.float32) for a in (mu1, logvar1, mu2, logvar2)]
    mu_l, lv_l = _poe_math_f32(*f32)
    return mu_l.astype(dtype), lv_l.astype(dtype)


def _pallas_whole_array(mu1, logvar1, mu2, logvar2):
    """Single whole-array block (tiny / forced path)."""
    orig_shape = mu1.shape
    dtype = mu1.dtype
    n = max(1, math.prod(orig_shape))
    flat = [a.reshape(1, n) for a in (mu1, logvar1, mu2, logvar2)]
    out_struct = jax.ShapeDtypeStruct((1, n), dtype)
    mu_lat, logvar_lat = pl.pallas_call(
        _poe_kernel,
        out_shape=(out_struct, out_struct),
    )(*flat)
    return mu_lat.reshape(orig_shape), logvar_lat.reshape(orig_shape)


def product_of_experts(mu1, logvar1, mu2, logvar2, *, force_pallas=False):
    assert mu1.shape == logvar1.shape == mu2.shape == logvar2.shape
    assert mu1.dtype == logvar1.dtype == mu2.dtype == logvar2.dtype
    orig_shape = mu1.shape
    dtype = mu1.dtype
    n = math.prod(orig_shape)

    # Tiny problems: fused XLA is strictly faster than a pallas_call launch.
    if not force_pallas and n < _SMALL_FALLBACK_ELEMS:
        return _fused_xla(mu1, logvar1, mu2, logvar2, dtype)

    # Lane-dense view: widest lane width that divides the flat element count
    # (no padding, no extra HBM passes).
    lane = next((c for c in _LANE_CANDIDATES if n > 0 and n % c == 0), None)

    if lane is None:
        # Ragged total size: tiny/forced -> single whole-array block,
        # otherwise fused XLA (never pay for padded copies).
        itemsize = jnp.dtype(dtype).itemsize
        if force_pallas or (6 * n * itemsize) <= 24 * 1024 * 1024:
            return _pallas_whole_array(mu1, logvar1, mu2, logvar2)
        return _fused_xla(mu1, logvar1, mu2, logvar2, dtype)

    rows = n // lane
    tb = _rows_per_tile()
    if rows <= tb:
        tb = rows                       # single block == full dim (always legal)
    num_tiles = pl.cdiv(rows, tb)       # uneven last block: OOB writes masked

    itemsize = jnp.dtype(dtype).itemsize
    # 6 streams (4 in + 2 out) x 2 pipeline buffers per stream.
    buf_bytes = 6 * 2 * tb * lane * itemsize
    vmem_limit = buf_bytes + (16 << 20)
    vmem_limit = min(vmem_limit, (100 << 20) if tb >= 1024 else (48 << 20))

    # Reshapes of a contiguous array are metadata-only: no extra HBM traffic.
    inputs = [a.reshape(rows, lane) for a in (mu1, logvar1, mu2, logvar2)]

    spec = pl.BlockSpec((tb, lane), lambda i: (i, 0))
    out_struct = jax.ShapeDtypeStruct((rows, lane), dtype)

    mu_lat, logvar_lat = pl.pallas_call(
        _poe_kernel,
        out_shape=(out_struct, out_struct),
        grid=(num_tiles,),
        in_specs=[spec, spec, spec, spec],
        out_specs=(spec, spec),
        compiler_params=pltpu.CompilerParams(
            dimension_semantics=("parallel",),
            vmem_limit_bytes=int(vmem_limit),
        ),
    )(*inputs)

    return mu_lat.reshape(orig_shape), logvar_lat.reshape(orig_shape)


# ----------------------------------------------------------------------------
# Reference (mirrors the PyTorch module op-for-op) and self-test.
# ----------------------------------------------------------------------------
def _reference(mu1, logvar1, mu2, logvar2):
    lv1 = jnp.clip(logvar1, -10.0, 10.0)
    lv2 = jnp.clip(logvar2, -10.0, 10.0)
    logvars = jnp.stack([lv1, lv2], axis=0)
    variances = jnp.exp(logvars)
    precisions = 1.0 / (variances + EPSILON)
    mus = jnp.stack([mu1, mu2], axis=0)
    weighted_mus = mus * precisions
    precision_sum = precisions.sum(axis=0) + 1.0
    mu_weighted_sum = weighted_mus.sum(axis=0)
    sigma_sq_latent = 1.0 / (precision_sum + EPSILON)
    mu_latent = sigma_sq_latent * mu_weighted_sum
    logvar_latent = jnp.log(sigma_sq_latent + EPSILON)
    return mu_latent, logvar_latent


def _run_case(key, shape, dtype, *, force_pallas=False, atol=1e-5, rtol=1e-5):
    k1, k2, k3, k4 = jax.random.split(key, 4)
    mu1 = jax.random.normal(k1, shape, dtype=jnp.float32).astype(dtype)
    logvar1 = jax.random.normal(k2, shape, dtype=jnp.float32).astype(dtype)
    mu2 = jax.random.normal(k3, shape, dtype=jnp.float32).astype(dtype)
    logvar2 = jax.random.normal(k4, shape, dtype=jnp.float32).astype(dtype)

    mu_latent, logvar_latent = product_of_experts(
        mu1, logvar1, mu2, logvar2, force_pallas=force_pallas)
    jax.block_until_ready((mu_latent, logvar_latent))

    mu_ref, logvar_ref = _reference(
        *(a.astype(jnp.float32) for a in (mu1, logvar1, mu2, logvar2)))

    assert mu_latent.shape == shape and logvar_latent.shape == shape
    assert mu_latent.dtype == dtype and logvar_latent.dtype == dtype
    assert jnp.allclose(mu_latent.astype(jnp.float32), mu_ref,
                        atol=atol, rtol=rtol)
    assert jnp.allclose(logvar_latent.astype(jnp.float32), logvar_ref,
                        atol=atol, rtol=rtol)


if __name__ == "__main__":
    key = jax.random.PRNGKey(0)
    keys = jax.random.split(key, 4)

    # 1) Small shape consistent with the module (batch=2, hidden=32),
    #    forced through the Pallas kernel (single whole-array block).
    _run_case(keys[0], (2, 32), jnp.float32, force_pallas=True)

    # 2) Same small shape via the default wrapper (fused-XLA fallback path).
    _run_case(keys[1], (2, 32), jnp.float32, force_pallas=False)

    # 3) Lane-dense pipelined f32 path (multi-tile grid, no padding).
    _run_case(keys[2], (2048, 1024), jnp.float32, force_pallas=False)

    # 4) bf16 I/O (half the HBM traffic); math still runs in f32 inside.
    _run_case(keys[3], (256, 1024), jnp.bfloat16, force_pallas=False,
              atol=5e-2, rtol=2e-2)

    print("KERNEL_OK")
</pallas_src>

<mosaic_0001>
module attributes {stable_mosaic.version = 11 : i64} {
  func.func @_poe_kernel(%arg0: memref<1x64xf32, #tpu.memory_space<vmem>>, %arg1: memref<1x64xf32, #tpu.memory_space<vmem>>, %arg2: memref<1x64xf32, #tpu.memory_space<vmem>>, %arg3: memref<1x64xf32, #tpu.memory_space<vmem>>, %arg4: memref<1x64xf32, #tpu.memory_space<vmem>>, %arg5: memref<1x64xf32, #tpu.memory_space<vmem>>) attributes {dimension_semantics = [], scalar_prefetch = 0 : i64, scratch_operands = 0 : i64, tpu.core_type = #tpu.core_type<tc>} {
    %c0 = arith.constant 0 : index
    %c0_0 = arith.constant 0 : index
    %0 = vector.load %arg0[%c0, %c0_0] : memref<1x64xf32, #tpu.memory_space<vmem>>, vector<1x64xf32>
    %c0_1 = arith.constant 0 : index
    %c0_2 = arith.constant 0 : index
    %1 = vector.load %arg1[%c0_1, %c0_2] : memref<1x64xf32, #tpu.memory_space<vmem>>, vector<1x64xf32>
    %c0_3 = arith.constant 0 : index
    %c0_4 = arith.constant 0 : index
    %2 = vector.load %arg2[%c0_3, %c0_4] : memref<1x64xf32, #tpu.memory_space<vmem>>, vector<1x64xf32>
    %c0_5 = arith.constant 0 : index
    %c0_6 = arith.constant 0 : index
    %3 = vector.load %arg3[%c0_5, %c0_6] : memref<1x64xf32, #tpu.memory_space<vmem>>, vector<1x64xf32>
    %cst = arith.constant -1.000000e+01 : f32
    %cst_7 = arith.constant 1.000000e+01 : f32
    %4 = vector.broadcast %cst : f32 to vector<1x64xf32>
    %5 = arith.maximumf %4, %1 : vector<1x64xf32>
    %6 = vector.broadcast %cst_7 : f32 to vector<1x64xf32>
    %7 = arith.minimumf %6, %5 : vector<1x64xf32>
    %cst_8 = arith.constant -1.000000e+01 : f32
    %cst_9 = arith.constant 1.000000e+01 : f32
    %8 = vector.broadcast %cst_8 : f32 to vector<1x64xf32>
    %9 = arith.maximumf %8, %3 : vector<1x64xf32>
    %10 = vector.broadcast %cst_9 : f32 to vector<1x64xf32>
    %11 = arith.minimumf %10, %9 : vector<1x64xf32>
    %12 = math.exp %7 : vector<1x64xf32>
    %cst_10 = arith.constant 9.99999993E-9 : f32
    %13 = vector.broadcast %cst_10 : f32 to vector<1x64xf32>
    %14 = arith.addf %12, %13 : vector<1x64xf32>
    %cst_11 = arith.constant 1.000000e+00 : f32
    %15 = vector.broadcast %cst_11 : f32 to vector<1x64xf32>
    %16 = arith.divf %15, %14 : vector<1x64xf32>
    %17 = math.exp %11 : vector<1x64xf32>
    %cst_12 = arith.constant 9.99999993E-9 : f32
    %18 = vector.broadcast %cst_12 : f32 to vector<1x64xf32>
    %19 = arith.addf %17, %18 : vector<1x64xf32>
    %cst_13 = arith.constant 1.000000e+00 : f32
    %20 = vector.broadcast %cst_13 : f32 to vector<1x64xf32>
    %21 = arith.divf %20, %19 : vector<1x64xf32>
    %22 = arith.addf %16, %21 : vector<1x64xf32>
    %cst_14 = arith.constant 1.000000e+00 : f32
    %23 = vector.broadcast %cst_14 : f32 to vector<1x64xf32>
    %24 = arith.addf %22, %23 : vector<1x64xf32>
    %25 = arith.mulf %0, %16 : vector<1x64xf32>
    %26 = arith.mulf %2, %21 : vector<1x64xf32>
    %27 = arith.addf %25, %26 : vector<1x64xf32>
    %cst_15 = arith.constant 9.99999993E-9 : f32
    %28 = vector.broadcast %cst_15 : f32 to vector<1x64xf32>
    %29 = arith.addf %24, %28 : vector<1x64xf32>
    %cst_16 = arith.constant 1.000000e+00 : f32
    %30 = vector.broadcast %cst_16 : f32 to vector<1x64xf32>
    %31 = arith.divf %30, %29 : vector<1x64xf32>
    %32 = arith.mulf %31, %27 : vector<1x64xf32>
    %cst_17 = arith.constant 9.99999993E-9 : f32
    %33 = vector.broadcast %cst_17 : f32 to vector<1x64xf32>
    %34 = arith.addf %31, %33 : vector<1x64xf32>
    %35 = math.log %34 : vector<1x64xf32>
    %c0_18 = arith.constant 0 : index
    %c0_19 = arith.constant 0 : index
    %36 = vector.load %arg4[%c0_18, %c0_19] : memref<1x64xf32, #tpu.memory_space<vmem>>, vector<1x64xf32>
    tpu.vector_store %arg4[%c0_18, %c0_19], %32 {strides = array<i32>} : memref<1x64xf32, #tpu.memory_space<vmem>>, vector<1x64xf32>,
    %c0_20 = arith.constant 0 : index
    %c0_21 = arith.constant 0 : index
    %37 = vector.load %arg5[%c0_20, %c0_21] : memref<1x64xf32, #tpu.memory_space<vmem>>, vector<1x64xf32>
    tpu.vector_store %arg5[%c0_20, %c0_21], %35 {strides = array<i32>} : memref<1x64xf32, #tpu.memory_space<vmem>>, vector<1x64xf32>,
    return
  }
}

</mosaic_0001>

<llo_original>
// kernel: tpu_custom_call.1
$region0: #{tpu_custom_call.1}
  #allocation0 [shape = 'u32[]', space=smem, size = 0x4, offset = 0x4, fixed_abs, tag = 'smem constant byte address 0x4 - core index']
  #allocation1 [shape = 'u32[72,128]{1,0:T(1,128)}', space=vmem, size = 0x9000, scoped, tag = 'internal scratch']
  %s0 = inlined_call_operand.hbm [shape: f32[1,64], index: 0, kind: input, shape index: {}]
  %s1 = inlined_call_operand.hbm [shape: f32[1,64], index: 1, kind: input, shape index: {}]
  %s2 = inlined_call_operand.vmem [shape: f32[1,64], index: 2, kind: input, shape index: {}]
  %s3 = inlined_call_operand.vmem [shape: f32[1,64], index: 3, kind: input, shape index: {}]
  %s4 = inlined_call_operand.hbm [shape: f32[1,64], index: 4, kind: output, shape index: {0}]
  %s5 = inlined_call_operand.hbm [shape: f32[1,64], index: 5, kind: output, shape index: {1}]
  %6 = xla_tuple %s4, %s5
  %s7 = sld [smem:[#allocation0]]
  $region42: #{tpu_custom_call.1} parent=0
    _
  %s9 = ssub.s32 1, %s7
  %s10 = scalar_select 0, %s9, %s7
  $region1: #{tpu_custom_call.1} parent=0
    #allocation2 [shape = 'u8[512]{0}', space=vmem, size = 0x400, scoped, tag = 'input window, operand 0, single buffered']
    #allocation3 [shape = 's32[1]{0}', space=sflag, size = 0x4, scoped, tag = 'scoped memory for tpu_custom_call.1']
    #allocation4 [shape = 's32[1]{0}', space=sflag, size = 0x4, scoped, tag = 'scoped memory for tpu_custom_call.1']
    #allocation5 [shape = 'u8[512]{0}', space=vmem, size = 0x400, scoped, tag = 'input window, operand 1, single buffered']
    #allocation6 [shape = 's32[1]{0}', space=sflag, size = 0x4, scoped, tag = 'scoped memory for tpu_custom_call.1']
    #allocation7 [shape = 'u8[512]{0}', space=vmem, size = 0x400, scoped, tag = 'output window, operand 0, single buffered']
    #allocation8 [shape = 'u8[512]{0}', space=vmem, size = 0x400, scoped, tag = 'output window, operand 1, single buffered']
    #allocation9 [shape = 's32[1]{0}', space=sflag, size = 0x4, scoped, tag = 'scoped memory for tpu_custom_call.1']
    %11 = vsyncpa [#allocation3], 0
    %12 = vsyncpa [#allocation6], 0
    %13 = vsyncpa [#allocation4], 0
    %14 = vsyncpa [#allocation9], 0
    // Predicated region
    $region2: #{tpu_custom_call.1} parent=1 // pred_check
      _
    $region3: #{tpu_custom_call.1} parent=1 // pred_check_branch
      %16 = sbr.rel (0) target = $region5
    $region4: #{tpu_custom_call.1} parent=1 // pred_region
      %18 = vsyncadd [#allocation3], 0
      %s20 = sshll.u32 %s0, 4
      %s21 = int_to_ptr.hbm [resolvable:$true] %s20
      %s22 = sshll.u32 [#allocation2], 4
      %s23 = int_to_ptr.vmem [resolvable:$true] %s22
      %25 = dma.hbm_to_vmem [thread:$0]  %s21, 16, %s23, [#allocation3]
    $region5: #{tpu_custom_call.1} parent=1 // pred_fallthru
      _
    // Predicated region
    $region6: #{tpu_custom_call.1} parent=1 // pred_check
      _
    $region7: #{tpu_custom_call.1} parent=1 // pred_check_branch
      %27 = sbr.rel (0) target = $region9
    $region8: #{tpu_custom_call.1} parent=1 // pred_region
      %29 = vsyncadd [#allocation6], 0
      %s31 = sshll.u32 %s1, 4
      %s32 = int_to_ptr.hbm [resolvable:$true] %s31
      %s33 = sshll.u32 [#allocation5], 4
      %s34 = int_to_ptr.vmem [resolvable:$true] %s33
      %36 = dma.hbm_to_vmem [thread:$0]  %s32, 16, %s34, [#allocation6]
    $region9: #{tpu_custom_call.1} parent=1 // pred_fallthru
      _
    // Predicated region
    $region10: #{tpu_custom_call.1} parent=1 // pred_check
      _
    $region11: #{tpu_custom_call.1} parent=1 // pred_check_branch
      %38 = sbr.rel (0) target = $region13
    $region12: #{tpu_custom_call.1} parent=1 // pred_region
      _
    $region13: #{tpu_custom_call.1} parent=1 // pred_fallthru
      _
    // Predicated region
    $region14: #{tpu_custom_call.1} parent=1 // pred_check
      _
    $region15: #{tpu_custom_call.1} parent=1 // pred_check_branch
      %40 = sbr.rel (0) target = $region17
    $region16: #{tpu_custom_call.1} parent=1 // pred_region
      _
    $region17: #{tpu_custom_call.1} parent=1 // pred_fallthru
      _
    // Predicated region
    $region18: #{tpu_custom_call.1} parent=1 // pred_check
      _
    $region19: #{tpu_custom_call.1} parent=1 // pred_check_branch
      %42 = sbr.rel (0) target = $region21
    $region20: #{tpu_custom_call.1} parent=1 // pred_region
      %44 = dma.done [#allocation3], 16
    $region21: #{tpu_custom_call.1} parent=1 // pred_fallthru
      _
    // Predicated region
    $region22: #{tpu_custom_call.1} parent=1 // pred_check
      _
    $region23: #{tpu_custom_call.1} parent=1 // pred_check_branch
      %46 = sbr.rel (0) target = $region25
    $region24: #{tpu_custom_call.1} parent=1 // pred_region
      %48 = dma.done [#allocation6], 16
    $region25: #{tpu_custom_call.1} parent=1 // pred_fallthru
      _
    %v49 = vld [vmem:[#allocation2] sm:$0x1]
    %v50 = vld [vmem:[#allocation5] sm:$0x1]
    %v51 = vld [vmem:[%s2] sm:$0x1]
    %v52 = vld [vmem:[%s3] sm:$0x1]
    %v53 = vmax.f32 %v50, -10.0
    %v54 = vmin.f32 %v53, 10.0
    %v55 = vmax.f32 %v52, -10.0
    %v56 = vmin.f32 %v55, 10.0
    %v57 = vmul.f32 %v54, 1.442695
    %v58 = vpow.pop %v57
    %v59 = vadd.f32 %v58, 1e-08
    %v60 = vrcp.pop %v59
    %v61 = vmul.f32 %v59, %v60
    %v62 = vsub.f32 1.0, %v61
    %v63 = vmul.f32 %v60, %v62
    %v64 = vadd.f32 %v60, %v63
    %vm65 = vweird.f32 %v59
    %vm66 = vweird.f32 %v60
    %vm67 = vmor %vm65, %vm66
    %v68 = vsel %vm67, %v60, %v64
    %v69 = vand.u32 2147483647, %v59
    %vm70 = vcmp.eq.f32.partialorder %v69, 8.507059e+37
    %v71 = vand.u32 %v59, 2147483648
    %v72 = vor.u32 1.1754944e-38, %v71
    %v73 = vsel %vm70, %v72, %v68
    %v74 = vmul.f32 1.0, %v73
    %v75 = vmul.f32 %v56, 1.442695
    %v76 = vpow.pop %v75
    %v77 = vadd.f32 %v76, 1e-08
    %v78 = vrcp.pop %v77
    %v79 = vmul.f32 %v77, %v78
    %v80 = vsub.f32 1.0, %v79
    %v81 = vmul.f32 %v78, %v80
    %v82 = vadd.f32 %v78, %v81
    %vm83 = vweird.f32 %v77
    %vm84 = vweird.f32 %v78
    %vm85 = vmor %vm83, %vm84
    %v86 = vsel %vm85, %v78, %v82
    %v87 = vand.u32 2147483647, %v77
    %vm88 = vcmp.eq.f32.partialorder %v87, 8.507059e+37
    %v89 = vand.u32 %v77, 2147483648
    %v90 = vor.u32 1.1754944e-38, %v89
    %v91 = vsel %vm88, %v90, %v86
    %v92 = vmul.f32 1.0, %v91
    %v93 = vadd.f32 %v74, %v92
    %v94 = vadd.f32 %v93, 1.0
    %v95 = vmul.f32 %v49, %v74
    %v96 = vmul.f32 %v51, %v92
    %v97 = vadd.f32 %v95, %v96
    %v98 = vadd.f32 %v94, 1e-08
    %v99 = vrcp.pop %v98
    %v100 = vmul.f32 %v98, %v99
    %v101 = vsub.f32 1.0, %v100
    %v102 = vmul.f32 %v99, %v101
    %v103 = vadd.f32 %v99, %v102
    %vm104 = vweird.f32 %v98
    %vm105 = vweird.f32 %v99
    %vm106 = vmor %vm104, %vm105
    %v107 = vsel %vm106, %v99, %v103
    %v108 = vand.u32 2147483647, %v98
    %vm109 = vcmp.eq.f32.partialorder %v108, 8.507059e+37
    %v110 = vand.u32 %v98, 2147483648
    %v111 = vor.u32 1.1754944e-38, %v110
    %v112 = vsel %vm109, %v111, %v107
    %v113 = vmul.f32 1.0, %v112
    %v114 = vmul.f32 %v113, %v97
    %v115 = vadd.f32 %v113, 1e-08
    %v116 = vlog2.pop %v115
    %v117 = vmul.f32 %v116, 0.6931472
    %vm118 = vcmask 516096
    %119 = vst.msk [vmem:[#allocation7] sm:$0x1] %vm118, %v114
    %120 = vst.msk [vmem:[#allocation8] sm:$0x1] %vm118, %v117
    // Predicated region
    $region26: #{tpu_custom_call.1} parent=1 // pred_check
      _
    $region27: #{tpu_custom_call.1} parent=1 // pred_check_branch
      %122 = sbr.rel (0) target = $region29
    $region28: #{tpu_custom_call.1} parent=1 // pred_region
      %124 = vsyncadd [#allocation4], 0
      %s126 = sshll.u32 [#allocation7], 4
      %s127 = int_to_ptr.vmem [resolvable:$true] %s126
      %s128 = sshll.u32 %s4, 4
      %s129 = int_to_ptr.hbm [resolvable:$true] %s128
      %131 = dma.vmem_to_hbm [thread:$0]  %s127, 16, %s129, [#allocation4]
    $region29: #{tpu_custom_call.1} parent=1 // pred_fallthru
      _
    // Predicated region
    $region30: #{tpu_custom_call.1} parent=1 // pred_check
      _
    $region31: #{tpu_custom_call.1} parent=1 // pred_check_branch
      %133 = sbr.rel (0) target = $region33
    $region32: #{tpu_custom_call.1} parent=1 // pred_region
      %135 = vsyncadd [#allocation9], 0
      %s137 = sshll.u32 [#allocation8], 4
      %s138 = int_to_ptr.vmem [resolvable:$true] %s137
      %s139 = sshll.u32 %s5, 4
      %s140 = int_to_ptr.hbm [resolvable:$true] %s139
      %142 = dma.vmem_to_hbm [thread:$0]  %s138, 16, %s140, [#allocation9]
    $region33: #{tpu_custom_call.1} parent=1 // pred_fallthru
      _
    // Predicated region
    $region34: #{tpu_custom_call.1} parent=1 // pred_check
      _
    $region35: #{tpu_custom_call.1} parent=1 // pred_check_branch
      %144 = sbr.rel (0) target = $region37
    $region36: #{tpu_custom_call.1} parent=1 // pred_region
      %146 = dma.done [#allocation4], 16
    $region37: #{tpu_custom_call.1} parent=1 // pred_fallthru
      _
    // Predicated region
    $region38: #{tpu_custom_call.1} parent=1 // pred_check
      _
    $region39: #{tpu_custom_call.1} parent=1 // pred_check_branch
      %148 = sbr.rel (0) target = $region41
    $region40: #{tpu_custom_call.1} parent=1 // pred_region
      %150 = dma.done [#allocation9], 16
    $region41: #{tpu_custom_call.1} parent=1 // pred_fallthru
      _
    %151 = vsyncpa [#allocation3], 1
    %152 = vsyncpa [#allocation6], 1
    %153 = vsyncpa [#allocation4], 1
    %154 = vsyncpa [#allocation9], 1

</llo_original>
